<compile_context>
chip_gen: v7x
topology: tpu7x:2x2x1
jax: 0.10.0
libtpu: 0.0.40
codegen_flags: <defaults>
</compile_context>

<pallas_src>
import functools

import jax
import jax.numpy as jnp
from jax import lax
from jax.experimental import pallas as pl
from jax.experimental.pallas import tpu as pltpu


def _round_up(n, m):
    return ((n + m - 1) // m) * m


def _default_pack():
    # Batch elements packed per MXU column: 4 for 256x256 MXUs (v6e/v7x),
    # 2 for 128x128 MXUs (v5e and older). Correctness is independent of g.
    try:
        kind = jax.devices()[0].device_kind.lower()
    except Exception:
        return 4
    for tag in ("v5 lite", "v5e", "v5litepod", "v4", "v3", "v2"):
        if tag in kind:
            return 2
    return 4


def winnet_kernel(xp_ref, wbd_ref, b1_ref, w2_ref, b2_ref, o_ref, *,
                  g, hidden, chunk, n_chunks):
    # xp_ref : [g*9, tile_cols]  bf16  packed activations (batch on lanes)
    # wbd_ref: [g*64, g*9]       bf16  block-diag(W1^T, ..., W1^T), VMEM-resident
    # b1_ref : [64, 1]           f32   VMEM-resident
    # w2_ref : [64, 1]           f32   VMEM-resident
    # b2_ref : [1, 1]            f32   SMEM scalar
    # o_ref  : [g, tile_cols]    f32   lane-dense output tile
    wbd = wbd_ref[...]
    b2 = b2_ref[0, 0]
    # Hoist the lane-broadcasts once per tile (JAX does not CSE broadcast_in_dim
    # inside the chunk loop).
    b1_b = jnp.broadcast_to(b1_ref[...], (hidden, chunk))   # [64, chunk] f32
    w2_b = jnp.broadcast_to(w2_ref[...], (hidden, chunk))   # [64, chunk] f32

    def body(c, carry):
        c0 = pl.multiple_of(c * chunk, chunk)
        x_c = xp_ref[:, pl.ds(c0, chunk)]                    # [g*9, chunk] bf16
        # fc1 for g packed batch groups in a single MXU pass, f32 accumulation.
        h = jnp.dot(wbd, x_c, preferred_element_type=jnp.float32)  # [g*64, chunk]
        # fc2 per group: bias + ReLU (VPU), w2-weighted sublane reduce (XLU),
        # sigmoid (EUP). Per-group processing bounds live vregs to ~[64, chunk].
        for j in range(g):
            hj = jnp.maximum(h[j * hidden:(j + 1) * hidden, :] + b1_b, 0.0)
            zj = jnp.sum(hj * w2_b, axis=0, keepdims=True) + b2     # [1, chunk]
            o_ref[pl.ds(j, 1), pl.ds(c0, chunk)] = jax.nn.sigmoid(zj)
        return carry

    lax.fori_loop(0, n_chunks, body, 0, unroll=True)


def winnet_forward(x, w1, b1, w2, b2, *, tile_b=4096, pack=None, chunk=128):
    """x: [B, 9] -> [B, 1]; same semantics as the PyTorch module (fc1 in bf16)."""
    B, F = x.shape
    H = w1.shape[1]  # 64
    g = _default_pack() if pack is None else int(pack)
    quantum = g * chunk  # tile granularity so tile_cols is chunk/lane aligned

    tb = min(tile_b, _round_up(max(B, 1), quantum))
    tb = max(quantum, _round_up(tb, quantum))
    num_tiles = pl.cdiv(B, tb)
    b_pad = num_tiles * tb
    tile_cols = tb // g
    total_cols = b_pad // g
    n_chunks = tile_cols // chunk

    # ---- wrapper-side layout plumbing (done in bf16: half the relayout bytes) ----
    # x_packed[j*F + k, i*tile_cols + c] = x[i*tb + j*tile_cols + c, k]
    # TODO(synk): if the caller can provide feature-major/packed x upstream, this
    # relayout pass disappears entirely.
    x_bf = jnp.pad(x.astype(jnp.bfloat16), ((0, b_pad - B), (0, 0)))       # [b_pad, 9]
    x_packed = (x_bf.reshape(num_tiles, g, tile_cols, F)
                    .transpose(1, 3, 0, 2)
                    .reshape(g * F, total_cols))                           # [g*9, total_cols]

    w1t = w1.T.astype(jnp.float32)                                          # [64, 9]
    wbd = jnp.kron(jnp.eye(g, dtype=jnp.float32), w1t).astype(jnp.bfloat16) # [g*64, g*9]
    b1c = b1.reshape(H, 1).astype(jnp.float32)
    w2c = w2.reshape(H, 1).astype(jnp.float32)
    b2s = b2.reshape(1, 1).astype(jnp.float32)

    kernel = functools.partial(winnet_kernel, g=g, hidden=H, chunk=chunk,
                               n_chunks=n_chunks)

    out = pl.pallas_call(
        kernel,
        out_shape=jax.ShapeDtypeStruct((g, total_cols), jnp.float32),
        grid_spec=pltpu.PrefetchScalarGridSpec(
            num_scalar_prefetch=0,
            grid=(num_tiles,),
            in_specs=[
                pl.BlockSpec((g * F, tile_cols), lambda i: (0, i)),   # packed x: pipelined
                pl.BlockSpec((g * H, g * F), lambda i: (0, 0)),       # block-diag W1^T: resident
                pl.BlockSpec((H, 1), lambda i: (0, 0)),               # b1: resident
                pl.BlockSpec((H, 1), lambda i: (0, 0)),               # w2: resident
                pl.BlockSpec(memory_space=pltpu.MemorySpace.SMEM),    # b2 scalar in SMEM
            ],
            out_specs=pl.BlockSpec((g, tile_cols), lambda i: (0, i)), # lane-dense output
        ),
        compiler_params=pltpu.CompilerParams(
            dimension_semantics=("parallel",),   # batch axis: data-parallel (2 TCs on v7x)
        ),
    )(x_packed, wbd, b1c, w2c, b2s)

    # Undo the packing: out[j, i*tile_cols + c] -> batch index i*tb + j*tile_cols + c.
    y = (out.reshape(g, num_tiles, tile_cols)
            .transpose(1, 0, 2)
            .reshape(b_pad, 1))[:B]
    return y


def init_params(key):
    # Deterministic synthetic init matching nn.Linear shapes:
    #   fc0: Linear(9, 64)  -> W1 [9, 64],  b1 [1, 64]
    #   fc2: Linear(64, 1)  -> W2 [64, 1],  b2 [1, 1]
    k1, k2, k3, k4 = jax.random.split(key, 4)
    w1 = jax.random.normal(k1, (9, 64), dtype=jnp.float32) * (1.0 / jnp.sqrt(9.0))
    b1 = jax.random.normal(k2, (1, 64), dtype=jnp.float32) * 0.01
    w2 = jax.random.normal(k3, (64, 1), dtype=jnp.float32) * (1.0 / jnp.sqrt(64.0))
    b2 = jax.random.normal(k4, (1, 1), dtype=jnp.float32) * 0.01
    return w1, b1, w2, b2


def winnet_ref(x, w1, b1, w2, b2):
    # Pure-JAX f32 reference for correctness checking.
    h = jnp.maximum(x @ w1 + b1, 0.0)
    return jax.nn.sigmoid(h @ w2 + b2)


if __name__ == "__main__":
    key = jax.random.PRNGKey(0)
    kx, kp, kx2, kx3 = jax.random.split(key, 4)
    w1, b1, w2, b2 = init_params(kp)

    # bf16 fc1 operands -> loosen tolerance vs the f32 reference (accumulation is f32).
    ATOL = 2e-2

    # Small batch (single tile, single chunk).
    x = jax.random.normal(kx, (8, 9), dtype=jnp.float32)
    out = jax.block_until_ready(winnet_forward(x, w1, b1, w2, b2))
    ref = winnet_ref(x, w1, b1, w2, b2)
    assert out.shape == (8, 1)
    assert jnp.allclose(out, ref, atol=ATOL, rtol=0.0), "mismatch vs reference (batch=8)"

    # Multi-tile + padding + packing-reassembly path (forces several grid steps).
    x2 = jax.random.normal(kx2, (1200, 9), dtype=jnp.float32)
    out2 = jax.block_until_ready(winnet_forward(x2, w1, b1, w2, b2, tile_b=512))
    ref2 = winnet_ref(x2, w1, b1, w2, b2)
    assert out2.shape == (1200, 1)
    assert jnp.allclose(out2, ref2, atol=ATOL, rtol=0.0), "mismatch vs reference (batch=1200)"

    # Explicit pack=2 (v5e-style MXU) path with a multi-chunk inner loop.
    x3 = jax.random.normal(kx3, (300, 9), dtype=jnp.float32)
    out3 = jax.block_until_ready(winnet_forward(x3, w1, b1, w2, b2, pack=2, tile_b=1024))
    ref3 = winnet_ref(x3, w1, b1, w2, b2)
    assert out3.shape == (300, 1)
    assert jnp.allclose(out3, ref3, atol=ATOL, rtol=0.0), "mismatch vs reference (batch=300, pack=2)"

    print("KERNEL_OK")
</pallas_src>

<mosaic_0001>
module attributes {stable_mosaic.version = 11 : i64} {
  func.func @winnet_kernel(%arg0: i32, %arg1: memref<36x128xbf16, #tpu.memory_space<vmem>>, %arg2: memref<256x36xbf16, #tpu.memory_space<vmem>>, %arg3: memref<64x1xf32, #tpu.memory_space<vmem>>, %arg4: memref<64x1xf32, #tpu.memory_space<vmem>>, %arg5: memref<1x1xf32, #tpu.memory_space<smem>>, %arg6: memref<4x128xf32, #tpu.memory_space<vmem>>) attributes {dimension_semantics = [#tpu.dimension_semantics<parallel>], iteration_bounds = array<i64: 1>, scalar_prefetch = 0 : i64, scratch_operands = 0 : i64, tpu.core_type = #tpu.core_type<tc>, window_params = [{transform_indices = @transform_0, window_bounds = array<i64: 36, 128>}, {pipeline_mode = #tpu.pipeline_mode<synchronous>, transform_indices = @transform_1, window_bounds = array<i64: 256, 36>}, {pipeline_mode = #tpu.pipeline_mode<synchronous>, transform_indices = @transform_2, window_bounds = array<i64: 64, 1>}, {pipeline_mode = #tpu.pipeline_mode<synchronous>, transform_indices = @transform_3, window_bounds = array<i64: 64, 1>}, {transform_indices = @transform_4, window_bounds = array<i64: 1, 1>}, {transform_indices = @transform_5, window_bounds = array<i64: 4, 128>}]} {
    %c0 = arith.constant 0 : index
    %c0_0 = arith.constant 0 : index
    %0 = vector.load %arg2[%c0, %c0_0] : memref<256x36xbf16, #tpu.memory_space<vmem>>, vector<256x36xbf16>
    %c0_1 = arith.constant 0 : index
    %c0_2 = arith.constant 0 : index
    %1 = memref.load %arg5[%c0_1, %c0_2] : memref<1x1xf32, #tpu.memory_space<smem>>
    %c0_3 = arith.constant 0 : index
    %c0_4 = arith.constant 0 : index
    %2 = vector.load %arg3[%c0_3, %c0_4] : memref<64x1xf32, #tpu.memory_space<vmem>>, vector<64x1xf32>
    %3 = vector.shape_cast %2 : vector<64x1xf32> to vector<64x1xf32>
    %4 = vector.broadcast %3 : vector<64x1xf32> to vector<64x128xf32>
    %c0_5 = arith.constant 0 : index
    %c0_6 = arith.constant 0 : index
    %5 = vector.load %arg4[%c0_5, %c0_6] : memref<64x1xf32, #tpu.memory_space<vmem>>, vector<64x1xf32>
    %6 = vector.shape_cast %5 : vector<64x1xf32> to vector<64x1xf32>
    %7 = vector.broadcast %6 : vector<64x1xf32> to vector<64x128xf32>
    %c0_i32 = arith.constant 0 : i32
    %c128_i32 = arith.constant 128 : i32
    %8 = arith.muli %c0_i32, %c128_i32 : i32
    %9 = tpu.assume_multiple %8, 128 : i32
    %c0_7 = arith.constant 0 : index
    %10 = arith.index_cast %9 : i32 to index
    %11 = vector.load %arg1[%c0_7, %10] : memref<36x128xbf16, #tpu.memory_space<vmem>>, vector<36x128xbf16>
    %cst = arith.constant dense<0.000000e+00> : vector<256x128xf32>
    %12 = tpu.matmul %0, %11, %cst {dimension_numbers = #tpu.dot_dimension_numbers<[1], [0], [0], [1], [0, 0, 1, 1], [], []>} : vector<256x36xbf16>, vector<36x128xbf16>, vector<256x128xf32> -> vector<256x128xf32>
    %13 = vector.extract_strided_slice %12 {offsets = [0, 0], sizes = [64, 128], strides = [1, 1]} : vector<256x128xf32> to vector<64x128xf32>
    %14 = arith.addf %13, %4 : vector<64x128xf32>
    %cst_8 = arith.constant 0.000000e+00 : f32
    %15 = vector.broadcast %cst_8 : f32 to vector<64x128xf32>
    %16 = arith.maximumf %14, %15 : vector<64x128xf32>
    %17 = arith.mulf %16, %7 : vector<64x128xf32>
    %cst_9 = arith.constant dense<0.000000e+00> : vector<128xf32>
    %18 = vector.multi_reduction <add>, %17, %cst_9 [0] : vector<64x128xf32> to vector<128xf32>
    %19 = vector.shape_cast %18 : vector<128xf32> to vector<1x128xf32>
    %20 = vector.broadcast %1 : f32 to vector<1x128xf32>
    %21 = arith.addf %19, %20 : vector<1x128xf32>
    %22 = arith.negf %21 : vector<1x128xf32>
    %23 = math.exp %22 : vector<1x128xf32>
    %cst_10 = arith.constant 1.000000e+00 : f32
    %24 = vector.broadcast %cst_10 : f32 to vector<1x128xf32>
    %25 = arith.addf %24, %23 : vector<1x128xf32>
    %26 = arith.divf %24, %25 : vector<1x128xf32>
    %c0_11 = arith.constant 0 : index
    %27 = arith.index_cast %9 : i32 to index
    %28 = vector.load %arg6[%c0_11, %27] : memref<4x128xf32, #tpu.memory_space<vmem>>, vector<1x128xf32>
    tpu.vector_store %arg6[%c0_11, %27], %26 {strides = array<i32>} : memref<4x128xf32, #tpu.memory_space<vmem>>, vector<1x128xf32>,
    %29 = vector.extract_strided_slice %12 {offsets = [64, 0], sizes = [64, 128], strides = [1, 1]} : vector<256x128xf32> to vector<64x128xf32>
    %30 = arith.addf %29, %4 : vector<64x128xf32>
    %cst_12 = arith.constant 0.000000e+00 : f32
    %31 = vector.broadcast %cst_12 : f32 to vector<64x128xf32>
    %32 = arith.maximumf %30, %31 : vector<64x128xf32>
    %33 = arith.mulf %32, %7 : vector<64x128xf32>
    %cst_13 = arith.constant dense<0.000000e+00> : vector<128xf32>
    %34 = vector.multi_reduction <add>, %33, %cst_13 [0] : vector<64x128xf32> to vector<128xf32>
    %35 = vector.shape_cast %34 : vector<128xf32> to vector<1x128xf32>
    %36 = vector.broadcast %1 : f32 to vector<1x128xf32>
    %37 = arith.addf %35, %36 : vector<1x128xf32>
    %38 = arith.negf %37 : vector<1x128xf32>
    %39 = math.exp %38 : vector<1x128xf32>
    %cst_14 = arith.constant 1.000000e+00 : f32
    %40 = vector.broadcast %cst_14 : f32 to vector<1x128xf32>
    %41 = arith.addf %40, %39 : vector<1x128xf32>
    %42 = arith.divf %40, %41 : vector<1x128xf32>
    %c1 = arith.constant 1 : index
    %43 = arith.index_cast %9 : i32 to index
    %44 = vector.load %arg6[%c1, %43] : memref<4x128xf32, #tpu.memory_space<vmem>>, vector<1x128xf32>
    tpu.vector_store %arg6[%c1, %43], %42 {strides = array<i32>} : memref<4x128xf32, #tpu.memory_space<vmem>>, vector<1x128xf32>,
    %45 = vector.extract_strided_slice %12 {offsets = [128, 0], sizes = [64, 128], strides = [1, 1]} : vector<256x128xf32> to vector<64x128xf32>
    %46 = arith.addf %45, %4 : vector<64x128xf32>
    %cst_15 = arith.constant 0.000000e+00 : f32
    %47 = vector.broadcast %cst_15 : f32 to vector<64x128xf32>
    %48 = arith.maximumf %46, %47 : vector<64x128xf32>
    %49 = arith.mulf %48, %7 : vector<64x128xf32>
    %cst_16 = arith.constant dense<0.000000e+00> : vector<128xf32>
    %50 = vector.multi_reduction <add>, %49, %cst_16 [0] : vector<64x128xf32> to vector<128xf32>
    %51 = vector.shape_cast %50 : vector<128xf32> to vector<1x128xf32>
    %52 = vector.broadcast %1 : f32 to vector<1x128xf32>
    %53 = arith.addf %51, %52 : vector<1x128xf32>
    %54 = arith.negf %53 : vector<1x128xf32>
    %55 = math.exp %54 : vector<1x128xf32>
    %cst_17 = arith.constant 1.000000e+00 : f32
    %56 = vector.broadcast %cst_17 : f32 to vector<1x128xf32>
    %57 = arith.addf %56, %55 : vector<1x128xf32>
    %58 = arith.divf %56, %57 : vector<1x128xf32>
    %c2 = arith.constant 2 : index
    %59 = arith.index_cast %9 : i32 to index
    %60 = vector.load %arg6[%c2, %59] : memref<4x128xf32, #tpu.memory_space<vmem>>, vector<1x128xf32>
    tpu.vector_store %arg6[%c2, %59], %58 {strides = array<i32>} : memref<4x128xf32, #tpu.memory_space<vmem>>, vector<1x128xf32>,
    %61 = vector.extract_strided_slice %12 {offsets = [192, 0], sizes = [64, 128], strides = [1, 1]} : vector<256x128xf32> to vector<64x128xf32>
    %62 = arith.addf %61, %4 : vector<64x128xf32>
    %cst_18 = arith.constant 0.000000e+00 : f32
    %63 = vector.broadcast %cst_18 : f32 to vector<64x128xf32>
    %64 = arith.maximumf %62, %63 : vector<64x128xf32>
    %65 = arith.mulf %64, %7 : vector<64x128xf32>
    %cst_19 = arith.constant dense<0.000000e+00> : vector<128xf32>
    %66 = vector.multi_reduction <add>, %65, %cst_19 [0] : vector<64x128xf32> to vector<128xf32>
    %67 = vector.shape_cast %66 : vector<128xf32> to vector<1x128xf32>
    %68 = vector.broadcast %1 : f32 to vector<1x128xf32>
    %69 = arith.addf %67, %68 : vector<1x128xf32>
    %70 = arith.negf %69 : vector<1x128xf32>
    %71 = math.exp %70 : vector<1x128xf32>
    %cst_20 = arith.constant 1.000000e+00 : f32
    %72 = vector.broadcast %cst_20 : f32 to vector<1x128xf32>
    %73 = arith.addf %72, %71 : vector<1x128xf32>
    %74 = arith.divf %72, %73 : vector<1x128xf32>
    %c3 = arith.constant 3 : index
    %75 = arith.index_cast %9 : i32 to index
    %76 = vector.load %arg6[%c3, %75] : memref<4x128xf32, #tpu.memory_space<vmem>>, vector<1x128xf32>
    tpu.vector_store %arg6[%c3, %75], %74 {strides = array<i32>} : memref<4x128xf32, #tpu.memory_space<vmem>>, vector<1x128xf32>,
    %c1_i32 = arith.constant 1 : i32
    return
  }
  func.func @transform_0(%arg0: i32) -> (i32, i32) {
    %c0_i32 = arith.constant 0 : i32
    %c0_i32_0 = arith.constant 0 : i32
    return %c0_i32, %arg0 : i32, i32
  }
  func.func @transform_1(%arg0: i32) -> (i32, i32) {
    %c0_i32 = arith.constant 0 : i32
    %c0_i32_0 = arith.constant 0 : i32
    %c0_i32_1 = arith.constant 0 : i32
    return %c0_i32, %c0_i32_0 : i32, i32
  }
  func.func @transform_2(%arg0: i32) -> (i32, i32) {
    %c0_i32 = arith.constant 0 : i32
    %c0_i32_0 = arith.constant 0 : i32
    %c0_i32_1 = arith.constant 0 : i32
    return %c0_i32, %c0_i32_0 : i32, i32
  }
  func.func @transform_3(%arg0: i32) -> (i32, i32) {
    %c0_i32 = arith.constant 0 : i32
    %c0_i32_0 = arith.constant 0 : i32
    %c0_i32_1 = arith.constant 0 : i32
    return %c0_i32, %c0_i32_0 : i32, i32
  }
  func.func @transform_4(%arg0: i32) -> (i32, i32) {
    %c0_i32 = arith.constant 0 : i32
    %c0_i32_0 = arith.constant 0 : i32
    %c0_i32_1 = arith.constant 0 : i32
    return %c0_i32, %c0_i32_0 : i32, i32
  }
  func.func @transform_5(%arg0: i32) -> (i32, i32) {
    %c0_i32 = arith.constant 0 : i32
    %c0_i32_0 = arith.constant 0 : i32
    return %c0_i32, %arg0 : i32, i32
  }
}

</mosaic_0001>

<llo_original>
// kernel: tpu_custom_call.1
$region0: #{tpu_custom_call.1}
  #allocation0 [shape = 'u32[]', space=smem, size = 0x4, offset = 0x4, fixed_abs, tag = 'smem constant byte address 0x4 - core index']
  #allocation1 [shape = 'u32[144,128]{1,0:T(1,128)}', space=vmem, size = 0x12000, scoped, tag = 'internal scratch']
  #allocation2 [shape = 'f32[1,1]{1,0:T(1,128)S(6)}', space=smem, size = 0x200, scoped, tag = 'scoped memory for tpu_custom_call.1']
  %s0 = inlined_call_operand.vmem [shape: bf16[36,128], index: 0, kind: input, shape index: {}]
  %s1 = inlined_call_operand.vmem [shape: bf16[256,36], index: 1, kind: input, shape index: {}]
  %s2 = inlined_call_operand.vmem [shape: f32[64,1], index: 2, kind: input, shape index: {}]
  %s3 = inlined_call_operand.vmem [shape: f32[64,1], index: 3, kind: input, shape index: {}]
  %s4 = inlined_call_operand.<no memory space> [shape: f32[1,1], index: 4, kind: input, shape index: {}]
  %s5 = inlined_call_operand.hbm [shape: f32[4,128], index: 5, kind: output, shape index: {}]
  %s6 = sld [smem:[#allocation0]]
  $region30: #{tpu_custom_call.1} parent=0
    _
  %s8 = ssub.s32 1, %s6
  %s9 = scalar_select 0, %s8, %s6
  %10 = sst [smem:[#allocation2]] %s4
  $region1: #{tpu_custom_call.1} parent=0
    #allocation3 [shape = 'u8[2048]{0}', space=vmem, size = 0x800, scoped, tag = 'output window, operand 0, single buffered']
    #allocation4 [shape = 's32[1]{0}', space=sflag, size = 0x4, scoped, tag = 'scoped memory for tpu_custom_call.1']
    %11 = vsyncpa [#allocation4], 0
    // Predicated region
    $region2: #{tpu_custom_call.1} parent=1 // pred_check
      _
    $region3: #{tpu_custom_call.1} parent=1 // pred_check_branch
      %13 = sbr.rel (0) target = $region5
    $region4: #{tpu_custom_call.1} parent=1 // pred_region
      _
    $region5: #{tpu_custom_call.1} parent=1 // pred_fallthru
      _
    // Predicated region
    $region6: #{tpu_custom_call.1} parent=1 // pred_check
      _
    $region7: #{tpu_custom_call.1} parent=1 // pred_check_branch
      %15 = sbr.rel (0) target = $region9
    $region8: #{tpu_custom_call.1} parent=1 // pred_region
      _
    $region9: #{tpu_custom_call.1} parent=1 // pred_fallthru
      _
    // Predicated region
    $region10: #{tpu_custom_call.1} parent=1 // pred_check
      _
    $region11: #{tpu_custom_call.1} parent=1 // pred_check_branch
      %17 = sbr.rel (0) target = $region13
    $region12: #{tpu_custom_call.1} parent=1 // pred_region
      _
    $region13: #{tpu_custom_call.1} parent=1 // pred_fallthru
      _
    // Predicated region
    $region14: #{tpu_custom_call.1} parent=1 // pred_check
      _
    $region15: #{tpu_custom_call.1} parent=1 // pred_check_branch
      %19 = sbr.rel (0) target = $region17
    $region16: #{tpu_custom_call.1} parent=1 // pred_region
      _
    $region17: #{tpu_custom_call.1} parent=1 // pred_fallthru
      _
    // Predicated region
    $region18: #{tpu_custom_call.1} parent=1 // pred_check
      _
    $region19: #{tpu_custom_call.1} parent=1 // pred_check_branch
      %21 = sbr.rel (0) target = $region21
    $region20: #{tpu_custom_call.1} parent=1 // pred_region
      _
    $region21: #{tpu_custom_call.1} parent=1 // pred_fallthru
      _
    %v23 = vld [vmem:[%s1] sm:$0xf]
    %v24 = vld [vmem:[%s1 + $0x4] sm:$0xf]
    %v25 = vld [vmem:[%s1 + $0x8] sm:$0xf]
    %v26 = vld [vmem:[%s1 + $0xc] sm:$0xf]
    %v27 = vld [vmem:[%s1 + $0x10] sm:$0xf]
    %v28 = vld [vmem:[%s1 + $0x14] sm:$0xf]
    %v29 = vld [vmem:[%s1 + $0x18] sm:$0xf]
    %v30 = vld [vmem:[%s1 + $0x1c] sm:$0xf]
    %v31 = vld [vmem:[%s1 + $0x20] sm:$0xf]
    %v32 = vld [vmem:[%s1 + $0x24] sm:$0xf]
    %v33 = vld [vmem:[%s1 + $0x28] sm:$0xf]
    %v34 = vld [vmem:[%s1 + $0x2c] sm:$0xf]
    %v35 = vld [vmem:[%s1 + $0x30] sm:$0xf]
    %v36 = vld [vmem:[%s1 + $0x34] sm:$0xf]
    %v37 = vld [vmem:[%s1 + $0x38] sm:$0xf]
    %v38 = vld [vmem:[%s1 + $0x3c] sm:$0xf]
    %v39 = vld [vmem:[%s1 + $0x40] sm:$0xf]
    %v40 = vld [vmem:[%s1 + $0x44] sm:$0xf]
    %v41 = vld [vmem:[%s1 + $0x48] sm:$0xf]
    %v42 = vld [vmem:[%s1 + $0x4c] sm:$0xf]
    %v43 = vld [vmem:[%s1 + $0x50] sm:$0xf]
    %v44 = vld [vmem:[%s1 + $0x54] sm:$0xf]
    %v45 = vld [vmem:[%s1 + $0x58] sm:$0xf]
    %v46 = vld [vmem:[%s1 + $0x5c] sm:$0xf]
    %v47 = vld [vmem:[%s1 + $0x60] sm:$0xf]
    %v48 = vld [vmem:[%s1 + $0x64] sm:$0xf]
    %v49 = vld [vmem:[%s1 + $0x68] sm:$0xf]
    %v50 = vld [vmem:[%s1 + $0x6c] sm:$0xf]
    %v51 = vld [vmem:[%s1 + $0x70] sm:$0xf]
    %v52 = vld [vmem:[%s1 + $0x74] sm:$0xf]
    %v53 = vld [vmem:[%s1 + $0x78] sm:$0xf]
    %v54 = vld [vmem:[%s1 + $0x7c] sm:$0xf]
    %s55 = sld [smem:[#allocation2]]
    %v56 = vld [vmem:[%s2] sm:$0xff]
    %v57 = vld [vmem:[%s2 + $0x8] sm:$0xff]
    %v58 = vld [vmem:[%s2 + $0x10] sm:$0xff]
    %v59 = vld [vmem:[%s2 + $0x18] sm:$0xff]
    %v60 = vld [vmem:[%s2 + $0x20] sm:$0xff]
    %v61 = vld [vmem:[%s2 + $0x28] sm:$0xff]
    %v62 = vld [vmem:[%s2 + $0x30] sm:$0xff]
    %v63 = vld [vmem:[%s2 + $0x38] sm:$0xff]
    %65 = vset.pattern.permute.xlu0 0
    %66 = vperm.xlu0 %65, %v56
    %v67 = vpop.permute.xlu0 %66
    %70 = vset.pattern.permute.xlu0 0
    %71 = vperm.xlu0 %70, %v57
    %v72 = vpop.permute.xlu0 %71
    %75 = vset.pattern.permute.xlu0 0
    %76 = vperm.xlu0 %75, %v58
    %v77 = vpop.permute.xlu0 %76
    %80 = vset.pattern.permute.xlu0 0
    %81 = vperm.xlu0 %80, %v59
    %v82 = vpop.permute.xlu0 %81
    %85 = vset.pattern.permute.xlu0 0
    %86 = vperm.xlu0 %85, %v60
    %v87 = vpop.permute.xlu0 %86
    %90 = vset.pattern.permute.xlu0 0
    %91 = vperm.xlu0 %90, %v61
    %v92 = vpop.permute.xlu0 %91
    %95 = vset.pattern.permute.xlu0 0
    %96 = vperm.xlu0 %95, %v62
    %v97 = vpop.permute.xlu0 %96
    %100 = vset.pattern.permute.xlu0 0
    %101 = vperm.xlu0 %100, %v63
    %v102 = vpop.permute.xlu0 %101
    %v104 = vld [vmem:[%s3] sm:$0xff]
    %v105 = vld [vmem:[%s3 + $0x8] sm:$0xff]
    %v106 = vld [vmem:[%s3 + $0x10] sm:$0xff]
    %v107 = vld [vmem:[%s3 + $0x18] sm:$0xff]
    %v108 = vld [vmem:[%s3 + $0x20] sm:$0xff]
    %v109 = vld [vmem:[%s3 + $0x28] sm:$0xff]
    %v110 = vld [vmem:[%s3 + $0x30] sm:$0xff]
    %v111 = vld [vmem:[%s3 + $0x38] sm:$0xff]
    %113 = vset.pattern.permute.xlu0 0
    %114 = vperm.xlu0 %113, %v104
    %v115 = vpop.permute.xlu0 %114
    %118 = vset.pattern.permute.xlu0 0
    %119 = vperm.xlu0 %118, %v105
    %v120 = vpop.permute.xlu0 %119
    %123 = vset.pattern.permute.xlu0 0
    %124 = vperm.xlu0 %123, %v106
    %v125 = vpop.permute.xlu0 %124
    %128 = vset.pattern.permute.xlu0 0
    %129 = vperm.xlu0 %128, %v107
    %v130 = vpop.permute.xlu0 %129
    %133 = vset.pattern.permute.xlu0 0
    %134 = vperm.xlu0 %133, %v108
    %v135 = vpop.permute.xlu0 %134
    %138 = vset.pattern.permute.xlu0 0
    %139 = vperm.xlu0 %138, %v109
    %v140 = vpop.permute.xlu0 %139
    %143 = vset.pattern.permute.xlu0 0
    %144 = vperm.xlu0 %143, %v110
    %v145 = vpop.permute.xlu0 %144
    %148 = vset.pattern.permute.xlu0 0
    %149 = vperm.xlu0 %148, %v111
    %v150 = vpop.permute.xlu0 %149
    %v152 = vld [vmem:[%s0] sm:$0xf]
    %v153 = vld [vmem:[%s0 + $0x4] sm:$0xf]
    %v154 = vld [vmem:[%s0 + $0x8] sm:$0xf]
    %v155 = vld [vmem:[%s0 + $0xc] sm:$0xf]
    %v156 = vld [vmem:[%s0 + $0x10] sm:$0x3]
    %v189 = vunpack.c.l.b16 %v23
    %v190 = vunpack.c.l.b16 %v24
    %v191 = vunpack.c.l.b16 %v25
    %v192 = vunpack.c.l.b16 %v26
    %v193 = vunpack.c.l.b16 %v27
    %v194 = vunpack.c.l.b16 %v28
    %v195 = vunpack.c.l.b16 %v29
    %v196 = vunpack.c.l.b16 %v30
    %v197 = vunpack.c.l.b16 %v31
    %v198 = vunpack.c.l.b16 %v32
    %v199 = vunpack.c.l.b16 %v33
    %v200 = vunpack.c.l.b16 %v34
    %v201 = vunpack.c.l.b16 %v35
    %v202 = vunpack.c.l.b16 %v36
    %v203 = vunpack.c.l.b16 %v37
    %v204 = vunpack.c.l.b16 %v38
    %v205 = vunpack.c.l.b16 %v39
    %v206 = vunpack.c.l.b16 %v40
    %v207 = vunpack.c.l.b16 %v41
    %v208 = vunpack.c.l.b16 %v42
    %v209 = vunpack.c.l.b16 %v43
    %v210 = vunpack.c.l.b16 %v44
    %v211 = vunpack.c.l.b16 %v45
    %v212 = vunpack.c.l.b16 %v46
    %v213 = vunpack.c.l.b16 %v47
    %v214 = vunpack.c.l.b16 %v48
    %v215 = vunpack.c.l.b16 %v49
    %v216 = vunpack.c.l.b16 %v50
    %v217 = vunpack.c.l.b16 %v51
    %v218 = vunpack.c.l.b16 %v52
    %v219 = vunpack.c.l.b16 %v53
    %v220 = vunpack.c.l.b16 %v54
    %v221 = vpack.c.b16 %v190, %v189
    %v222 = vpack.c.b16 %v192, %v191
    %v223 = vpack.c.b16 %v194, %v193
    %v224 = vpack.c.b16 %v196, %v195
    %v225 = vpack.c.b16 %v198, %v197
    %v226 = vpack.c.b16 %v200, %v199
    %v227 = vpack.c.b16 %v202, %v201
    %v228 = vpack.c.b16 %v204, %v203
    %v229 = vpack.c.b16 %v206, %v205
    %v230 = vpack.c.b16 %v208, %v207
    %v231 = vpack.c.b16 %v210, %v209
    %v232 = vpack.c.b16 %v212, %v211
    %v233 = vpack.c.b16 %v214, %v213
    %v234 = vpack.c.b16 %v216, %v215
    %v235 = vpack.c.b16 %v218, %v217
    %v236 = vpack.c.b16 %v220, %v219
    %v242 = vunpack.c.l.b16 %v152
    %v243 = vunpack.c.l.b16 %v153
    %v244 = vunpack.c.l.b16 %v154
    %v245 = vunpack.c.l.b16 %v155
    %v246 = vunpack.c.l.b16 %v156
    %v247 = vpack.c.b16 %v243, %v242
    %v248 = vpack.c.b16 %v245, %v244
    %v249 = vpack.c.b16 %v246, %v246
    %vm252 = vcmask 293888
    %v254 = vsel %vm252, %v221, 0
    %v257 = vsel %vm252, %v222, 0
    %v260 = vsel %vm252, %v223, 0
    %v263 = vsel %vm252, %v224, 0
    %v266 = vsel %vm252, %v225, 0
    %v269 = vsel %vm252, %v226, 0
    %v272 = vsel %vm252, %v227, 0
    %v275 = vsel %vm252, %v228, 0
    %v278 = vsel %vm252, %v229, 0
    %v281 = vsel %vm252, %v230, 0
    %v284 = vsel %vm252, %v231, 0
    %v287 = vsel %vm252, %v232, 0
    %v290 = vsel %vm252, %v233, 0
    %v293 = vsel %vm252, %v234, 0
    %v296 = vsel %vm252, %v235, 0
    %v299 = vsel %vm252, %v236, 0
    %vm301 = vcmask 1041408
    %v303 = vsel %vm301, %v249, 0
    %305 = vmatprep.subr.bf16.mxu0 0
    %306 = vmatpush1.bf16.msra.mxu0 %v247
    %307 = vmatprep.subr.bf16.mxu0 0
    %308 = vmatpush1.bf16.msra.mxu0 %v248
    %309 = vmatprep.subr.bf16.mxu0 0
    %310 = vmatpush1.bf16.msra.mxu0 %v303
    %311 = vmatprep.subr.bf16.mxu0 0
    %312 = vmatpush1.bf16.msra.mxu0 0
    %313 = vmatprep.subr.bf16.mxu0 0
    %314 = vmatpush1.bf16.msra.mxu0 0
    %315 = vmatprep.subr.bf16.mxu0 0
    %316 = vmatpush1.bf16.msra.mxu0 0
    %317 = vmatprep.subr.bf16.mxu0 0
    %318 = vmatpush1.bf16.msra.mxu0 0
    %319 = vmatprep.subr.bf16.mxu0 0
    %320 = vmatpush1.bf16.msra.mxu0 0
    %321 = vmatprep.subr.bf16.mxu0 0
    %322 = vmatpush1.bf16.msra.mxu0 0
    %323 = vmatprep.subr.bf16.mxu0 0
    %324 = vmatpush1.bf16.msra.mxu0 0
    %325 = vmatprep.subr.bf16.mxu0 0
    %326 = vmatpush1.bf16.msra.mxu0 0
    %327 = vmatprep.subr.bf16.mxu0 0
    %328 = vmatpush1.bf16.msra.mxu0 0
    %329 = vmatprep.subr.bf16.mxu0 0
    %330 = vmatpush1.bf16.msra.mxu0 0
    %331 = vmatprep.subr.bf16.mxu0 0
    %332 = vmatpush1.bf16.msra.mxu0 0
    %333 = vmatprep.subr.bf16.mxu0 0
    %334 = vmatpush1.bf16.msra.mxu0 0
    %335 = vmatprep.subr.bf16.mxu0 0
    %336 = vmatpush1.bf16.msra.mxu0 0
    %337 = vmatprep.mubr.bf16.mxu0 0
    %338 = vmatmul.mubr.bf16.gmra.mrb[0].mxu0 %v254
    %v339 = vpop.f32.mrb[0].mxu0
    %v340 = vadd.f32 0.0, %v339
    %v341 = vpop.f32.mrb[0].mxu0
    %v342 = vpop.f32.mrb[0].mxu0
    %v343 = vadd.f32 0.0, %v342
    %v344 = vpop.f32.mrb[0].mxu0
    %345 = vmatprep.mubr.bf16.mxu0 0
    %346 = vmatmul.mubr.bf16.gmra.mrb[0].mxu0 %v257
    %v347 = vpop.f32.mrb[0].mxu0
    %v348 = vadd.f32 0.0, %v347
    %v349 = vpop.f32.mrb[0].mxu0
    %v350 = vpop.f32.mrb[0].mxu0
    %v351 = vadd.f32 0.0, %v350
    %v352 = vpop.f32.mrb[0].mxu0
    %353 = vmatprep.mubr.bf16.mxu0 0
    %354 = vmatmul.mubr.bf16.gmra.mrb[0].mxu0 %v260
    %v355 = vpop.f32.mrb[0].mxu0
    %v356 = vadd.f32 0.0, %v355
    %v357 = vpop.f32.mrb[0].mxu0
    %v358 = vpop.f32.mrb[0].mxu0
    %v359 = vadd.f32 0.0, %v358
    %v360 = vpop.f32.mrb[0].mxu0
    %361 = vmatprep.mubr.bf16.mxu0 0
    %362 = vmatmul.mubr.bf16.gmra.mrb[0].mxu0 %v263
    %v363 = vpop.f32.mrb[0].mxu0
    %v364 = vadd.f32 0.0, %v363
    %v365 = vpop.f32.mrb[0].mxu0
    %v366 = vpop.f32.mrb[0].mxu0
    %v367 = vadd.f32 0.0, %v366
    %v368 = vpop.f32.mrb[0].mxu0
    %369 = vmatprep.mubr.bf16.mxu0 0
    %370 = vmatmul.mubr.bf16.gmra.mrb[0].mxu0 %v266
    %v371 = vpop.f32.mrb[0].mxu0
    %v372 = vadd.f32 0.0, %v371
    %v373 = vpop.f32.mrb[0].mxu0
    %v374 = vpop.f32.mrb[0].mxu0
    %v375 = vadd.f32 0.0, %v374
    %v376 = vpop.f32.mrb[0].mxu0
    %377 = vmatprep.mubr.bf16.mxu0 0
    %378 = vmatmul.mubr.bf16.gmra.mrb[0].mxu0 %v269
    %v379 = vpop.f32.mrb[0].mxu0
    %v380 = vadd.f32 0.0, %v379
    %v381 = vpop.f32.mrb[0].mxu0
    %v382 = vpop.f32.mrb[0].mxu0
    %v383 = vadd.f32 0.0, %v382
    %v384 = vpop.f32.mrb[0].mxu0
    %385 = vmatprep.mubr.bf16.mxu0 0
    %386 = vmatmul.mubr.bf16.gmra.mrb[0].mxu0 %v272
    %v387 = vpop.f32.mrb[0].mxu0
    %v388 = vadd.f32 0.0, %v387
    %v389 = vpop.f32.mrb[0].mxu0
    %v390 = vpop.f32.mrb[0].mxu0
    %v391 = vadd.f32 0.0, %v390
    %v392 = vpop.f32.mrb[0].mxu0
    %393 = vmatprep.mubr.bf16.mxu0 0
    %394 = vmatmul.mubr.bf16.gmra.mrb[0].mxu0 %v275
    %v395 = vpop.f32.mrb[0].mxu0
    %v396 = vadd.f32 0.0, %v395
    %v397 = vpop.f32.mrb[0].mxu0
    %v398 = vpop.f32.mrb[0].mxu0
    %v399 = vadd.f32 0.0, %v398
    %v400 = vpop.f32.mrb[0].mxu0
    %401 = vmatprep.mubr.bf16.mxu0 0
    %402 = vmatmul.mubr.bf16.gmra.mrb[0].mxu0 %v278
    %v403 = vpop.f32.mrb[0].mxu0
    %v404 = vadd.f32 0.0, %v403
    %v405 = vpop.f32.mrb[0].mxu0
    %v406 = vpop.f32.mrb[0].mxu0
    %v407 = vadd.f32 0.0, %v406
    %v408 = vpop.f32.mrb[0].mxu0
    %409 = vmatprep.mubr.bf16.mxu0 0
    %410 = vmatmul.mubr.bf16.gmra.mrb[0].mxu0 %v281
    %v411 = vpop.f32.mrb[0].mxu0
    %v412 = vadd.f32 0.0, %v411
    %v413 = vpop.f32.mrb[0].mxu0
    %v414 = vpop.f32.mrb[0].mxu0
    %v415 = vadd.f32 0.0, %v414
    %v416 = vpop.f32.mrb[0].mxu0
    %417 = vmatprep.mubr.bf16.mxu0 0
    %418 = vmatmul.mubr.bf16.gmra.mrb[0].mxu0 %v284
    %v419 = vpop.f32.mrb[0].mxu0
    %v420 = vadd.f32 0.0, %v419
    %v421 = vpop.f32.mrb[0].mxu0
    %v422 = vpop.f32.mrb[0].mxu0
    %v423 = vadd.f32 0.0, %v422
    %v424 = vpop.f32.mrb[0].mxu0
    %425 = vmatprep.mubr.bf16.mxu0 0
    %426 = vmatmul.mubr.bf16.gmra.mrb[0].mxu0 %v287
    %v427 = vpop.f32.mrb[0].mxu0
    %v428 = vadd.f32 0.0, %v427
    %v429 = vpop.f32.mrb[0].mxu0
    %v430 = vpop.f32.mrb[0].mxu0
    %v431 = vadd.f32 0.0, %v430
    %v432 = vpop.f32.mrb[0].mxu0
    %433 = vmatprep.mubr.bf16.mxu0 0
    %434 = vmatmul.mubr.bf16.gmra.mrb[0].mxu0 %v290
    %v435 = vpop.f32.mrb[0].mxu0
    %v436 = vadd.f32 0.0, %v435
    %v437 = vpop.f32.mrb[0].mxu0
    %v438 = vpop.f32.mrb[0].mxu0
    %v439 = vadd.f32 0.0, %v438
    %v440 = vpop.f32.mrb[0].mxu0
    %441 = vmatprep.mubr.bf16.mxu0 0
    %442 = vmatmul.mubr.bf16.gmra.mrb[0].mxu0 %v293
    %v443 = vpop.f32.mrb[0].mxu0
    %v444 = vadd.f32 0.0, %v443
    %v445 = vpop.f32.mrb[0].mxu0
    %v446 = vpop.f32.mrb[0].mxu0
    %v447 = vadd.f32 0.0, %v446
    %v448 = vpop.f32.mrb[0].mxu0
    %449 = vmatprep.mubr.bf16.mxu0 0
    %450 = vmatmul.mubr.bf16.gmra.mrb[0].mxu0 %v296
    %v451 = vpop.f32.mrb[0].mxu0
    %v452 = vadd.f32 0.0, %v451
    %v453 = vpop.f32.mrb[0].mxu0
    %v454 = vpop.f32.mrb[0].mxu0
    %v455 = vadd.f32 0.0, %v454
    %v456 = vpop.f32.mrb[0].mxu0
    %457 = vmatprep.mubr.bf16.mxu0 0
    %458 = vmatmul.mubr.bf16.gmra.mrb[0].mxu0 %v299
    %v459 = vpop.f32.mrb[0].mxu0
    %v460 = vadd.f32 0.0, %v459
    %v461 = vpop.f32.mrb[0].mxu0
    %v462 = vpop.f32.mrb[0].mxu0
    %v463 = vadd.f32 0.0, %v462
    %v464 = vpop.f32.mrb[0].mxu0
    %465 = vdwg.mxu0
    %v466 = vadd.f32 %v340, %v67
    %v467 = vadd.f32 %v343, %v72
    %v468 = vadd.f32 %v348, %v77
    %v469 = vadd.f32 %v351, %v82
    %v470 = vadd.f32 %v356, %v87
    %v471 = vadd.f32 %v359, %v92
    %v472 = vadd.f32 %v364, %v97
    %v473 = vadd.f32 %v367, %v102
    %v474 = vmax.f32 %v466, 0.0
    %v475 = vmax.f32 %v467, 0.0
    %v476 = vmax.f32 %v468, 0.0
    %v477 = vmax.f32 %v469, 0.0
    %v478 = vmax.f32 %v470, 0.0
    %v479 = vmax.f32 %v471, 0.0
    %v480 = vmax.f32 %v472, 0.0
    %v481 = vmax.f32 %v473, 0.0
    %v482 = vmul.f32 %v474, %v115
    %v483 = vmul.f32 %v475, %v120
    %v484 = vmul.f32 %v476, %v125
    %v485 = vmul.f32 %v477, %v130
    %v486 = vmul.f32 %v478, %v135
    %v487 = vmul.f32 %v479, %v140
    %v488 = vmul.f32 %v480, %v145
    %v489 = vmul.f32 %v481, %v150
    %v490 = vadd.f32 %v482, %v483
    %v491 = vadd.f32 %v490, %v484
    %v492 = vadd.f32 %v491, %v485
    %v493 = vadd.f32 %v492, %v486
    %v494 = vadd.f32 %v493, %v487
    %v495 = vadd.f32 %v494, %v488
    %v496 = vadd.f32 %v495, %v489
    %v497 = vrot.slane %v496, 4
    %v498 = vadd.f32 %v496, %v497
    %v499 = vrot.slane %v498, 2
    %v500 = vadd.f32 %v498, %v499
    %v501 = vrot.slane %v500, 1
    %v502 = vadd.f32 %v500, %v501
    %v503 = vstv %s55
    %v504 = vadd.f32 %v502, %v503
    %v505 = vxor.u32 %v504, 2147483648
    %v506 = vmul.f32 %v505, 1.442695
    %v507 = vpow.pop %v506
    %v508 = vadd.f32 %v507, 1.0
    %v509 = vrcp.pop %v508
    %v510 = vmul.f32 1.0, %v509
    %511 = vst [vmem:[#allocation3] sm:$0x1] %v510
    %v512 = vadd.f32 %v372, %v67
    %v513 = vadd.f32 %v375, %v72
    %v514 = vadd.f32 %v380, %v77
    %v515 = vadd.f32 %v383, %v82
    %v516 = vadd.f32 %v388, %v87
    %v517 = vadd.f32 %v391, %v92
    %v518 = vadd.f32 %v396, %v97
    %v519 = vadd.f32 %v399, %v102
    %v520 = vmax.f32 %v512, 0.0
    %v521 = vmax.f32 %v513, 0.0
    %v522 = vmax.f32 %v514, 0.0
    %v523 = vmax.f32 %v515, 0.0
    %v524 = vmax.f32 %v516, 0.0
    %v525 = vmax.f32 %v517, 0.0
    %v526 = vmax.f32 %v518, 0.0
    %v527 = vmax.f32 %v519, 0.0
    %v528 = vmul.f32 %v520, %v115
    %v529 = vmul.f32 %v521, %v120
    %v530 = vmul.f32 %v522, %v125
    %v531 = vmul.f32 %v523, %v130
    %v532 = vmul.f32 %v524, %v135
    %v533 = vmul.f32 %v525, %v140
    %v534 = vmul.f32 %v526, %v145
    %v535 = vmul.f32 %v527, %v150
    %v536 = vadd.f32 %v528, %v529
    %v537 = vadd.f32 %v536, %v530
    %v538 = vadd.f32 %v537, %v531
    %v539 = vadd.f32 %v538, %v532
    %v540 = vadd.f32 %v539, %v533
    %v541 = vadd.f32 %v540, %v534
    %v542 = vadd.f32 %v541, %v535
    %v543 = vrot.slane %v542, 4
    %v544 = vadd.f32 %v542, %v543
    %v545 = vrot.slane %v544, 2
    %v546 = vadd.f32 %v544, %v545
    %v547 = vrot.slane %v546, 1
    %v548 = vadd.f32 %v546, %v547
    %v549 = vadd.f32 %v548, %v503
    %v550 = vxor.u32 %v549, 2147483648
    %v551 = vmul.f32 %v550, 1.442695
    %v552 = vpow.pop %v551
    %v553 = vadd.f32 %v552, 1.0
    %v554 = vrcp.pop %v553
    %v555 = vmul.f32 1.0, %v554
    %556 = vst [vmem:[#allocation3 + $0x1] sm:$0x1] %v555
    %v557 = vadd.f32 %v404, %v67
    %v558 = vadd.f32 %v407, %v72
    %v559 = vadd.f32 %v412, %v77
    %v560 = vadd.f32 %v415, %v82
    %v561 = vadd.f32 %v420, %v87
    %v562 = vadd.f32 %v423, %v92
    %v563 = vadd.f32 %v428, %v97
    %v564 = vadd.f32 %v431, %v102
    %v565 = vmax.f32 %v557, 0.0
    %v566 = vmax.f32 %v558, 0.0
    %v567 = vmax.f32 %v559, 0.0
    %v568 = vmax.f32 %v560, 0.0
    %v569 = vmax.f32 %v561, 0.0
    %v570 = vmax.f32 %v562, 0.0
    %v571 = vmax.f32 %v563, 0.0
    %v572 = vmax.f32 %v564, 0.0
    %v573 = vmul.f32 %v565, %v115
    %v574 = vmul.f32 %v566, %v120
    %v575 = vmul.f32 %v567, %v125
    %v576 = vmul.f32 %v568, %v130
    %v577 = vmul.f32 %v569, %v135
    %v578 = vmul.f32 %v570, %v140
    %v579 = vmul.f32 %v571, %v145
    %v580 = vmul.f32 %v572, %v150
    %v581 = vadd.f32 %v573, %v574
    %v582 = vadd.f32 %v581, %v575
    %v583 = vadd.f32 %v582, %v576
    %v584 = vadd.f32 %v583, %v577
    %v585 = vadd.f32 %v584, %v578
    %v586 = vadd.f32 %v585, %v579
    %v587 = vadd.f32 %v586, %v580
    %v588 = vrot.slane %v587, 4
    %v589 = vadd.f32 %v587, %v588
    %v590 = vrot.slane %v589, 2
    %v591 = vadd.f32 %v589, %v590
    %v592 = vrot.slane %v591, 1
    %v593 = vadd.f32 %v591, %v592
    %v594 = vadd.f32 %v593, %v503
    %v595 = vxor.u32 %v594, 2147483648
    %v596 = vmul.f32 %v595, 1.442695
    %v597 = vpow.pop %v596
    %v598 = vadd.f32 %v597, 1.0
    %v599 = vrcp.pop %v598
    %v600 = vmul.f32 1.0, %v599
    %601 = vst [vmem:[#allocation3 + $0x2] sm:$0x1] %v600
    %v602 = vadd.f32 %v436, %v67
    %v603 = vadd.f32 %v439, %v72
    %v604 = vadd.f32 %v444, %v77
    %v605 = vadd.f32 %v447, %v82
    %v606 = vadd.f32 %v452, %v87
    %v607 = vadd.f32 %v455, %v92
    %v608 = vadd.f32 %v460, %v97
    %v609 = vadd.f32 %v463, %v102
    %v610 = vmax.f32 %v602, 0.0
    %v611 = vmax.f32 %v603, 0.0
    %v612 = vmax.f32 %v604, 0.0
    %v613 = vmax.f32 %v605, 0.0
    %v614 = vmax.f32 %v606, 0.0
    %v615 = vmax.f32 %v607, 0.0
    %v616 = vmax.f32 %v608, 0.0
    %v617 = vmax.f32 %v609, 0.0
    %v618 = vmul.f32 %v610, %v115
    %v619 = vmul.f32 %v611, %v120
    %v620 = vmul.f32 %v612, %v125
    %v621 = vmul.f32 %v613, %v130
    %v622 = vmul.f32 %v614, %v135
    %v623 = vmul.f32 %v615, %v140
    %v624 = vmul.f32 %v616, %v145
    %v625 = vmul.f32 %v617, %v150
    %v626 = vadd.f32 %v618, %v619
    %v627 = vadd.f32 %v626, %v620
    %v628 = vadd.f32 %v627, %v621
    %v629 = vadd.f32 %v628, %v622
    %v630 = vadd.f32 %v629, %v623
    %v631 = vadd.f32 %v630, %v624
    %v632 = vadd.f32 %v631, %v625
    %v633 = vrot.slane %v632, 4
    %v634 = vadd.f32 %v632, %v633
    %v635 = vrot.slane %v634, 2
    %v636 = vadd.f32 %v634, %v635
    %v637 = vrot.slane %v636, 1
    %v638 = vadd.f32 %v636, %v637
    %v639 = vadd.f32 %v638, %v503
    %v640 = vxor.u32 %v639, 2147483648
    %v641 = vmul.f32 %v640, 1.442695
    %v642 = vpow.pop %v641
    %v643 = vadd.f32 %v642, 1.0
    %v644 = vrcp.pop %v643
    %v645 = vmul.f32 1.0, %v644
    %646 = vst [vmem:[#allocation3 + $0x3] sm:$0x1] %v645
    // Predicated region
    $region22: #{tpu_custom_call.1} parent=1 // pred_check
      _
    $region23: #{tpu_custom_call.1} parent=1 // pred_check_branch
      %648 = sbr.rel (0) target = $region25
    $region24: #{tpu_custom_call.1} parent=1 // pred_region
      %s650 = ssub.s32 64, 64
      %651 = vsyncadd [#allocation4], %s650
      %s653 = sshll.u32 [#allocation3], 4
      %s654 = int_to_ptr.vmem [resolvable:$true] %s653
      %656 = dma.vmem_to_hbm [thread:$0]  %s654, 64, %s5, [#allocation4]
    $region25: #{tpu_custom_call.1} parent=1 // pred_fallthru
      _
    // Predicated region
    $region26: #{tpu_custom_call.1} parent=1 // pred_check
      _
    $region27: #{tpu_custom_call.1} parent=1 // pred_check_branch
      %658 = sbr.rel (0) target = $region29
    $region28: #{tpu_custom_call.1} parent=1 // pred_region
      %659 = dma.done [#allocation4], 64
    $region29: #{tpu_custom_call.1} parent=1 // pred_fallthru
      _
    %660 = vsyncpa [#allocation4], 1

</llo_original>
